<compile_context>
chip_gen: v5e
topology: v5e:2x2
jax: 0.10.0
libtpu: 0.0.40
codegen_flags: <defaults>
</compile_context>

<pallas_src>
import functools

import jax
import jax.numpy as jnp
from jax.experimental import pallas as pl
from jax.experimental.pallas import tpu as pltpu

LANE = 128
SUBLANE = 8


def _round_up(x, m):
    return ((x + m - 1) // m) * m


def _mlp_fused_kernel(*refs, n_layers, dout):
    """refs = (x_ref, w0_ref, b0_ref, ..., w{L-1}_ref, b{L-1}_ref, o_ref)."""
    x_ref = refs[0]
    o_ref = refs[-1]
    wb = refs[1:-1]

    h = x_ref[...]
    for i in range(n_layers):
        w = wb[2 * i][...]
        b = wb[2 * i + 1][...]
        # MXU matmul with explicit f32 accumulation.
        h = jnp.dot(h, w, preferred_element_type=jnp.float32) + b
        if i < n_layers - 1:          # ReLU between layers, none after last
            h = jnp.maximum(h, 0.0)
    # Only the first `dout` lanes are real (inner dims are 128-lane padded);
    # write back just those so HBM writeback is ~dout*4 B per batch row.
    o_ref[...] = h[:, :dout].astype(o_ref.dtype)


def _pad_params(params):
    """Zero-pad weights/biases: layer-0 din to a sublane multiple (matches the
    unpadded streamed x), all other dims to 128-lane multiples (inert)."""
    padded = []
    for i, (w, b) in enumerate(params):
        din, dout = w.shape
        din_p = _round_up(din, SUBLANE) if i == 0 else _round_up(din, LANE)
        dout_p = _round_up(dout, LANE)
        w_p = jnp.zeros((din_p, dout_p), w.dtype).at[:din, :dout].set(w)
        b_p = jnp.zeros((1, dout_p), b.dtype).at[0, :dout].set(b)
        padded.append((w_p, b_p))
    return padded


def mlp_forward(params, x, *, max_batch_tile=1024):
    """Fused-MLP forward matching MLP.forward (Linear / ReLU / ... / Linear)."""
    B, Din = x.shape
    n_layers = len(params)
    dout = params[-1][0].shape[1]          # real output width (1)

    padded = _pad_params(params)
    din0_p = padded[0][0].shape[0]         # sublane-aligned input width

    # Batch tiling: TB rows per grid step ("parallel" axis); pad B up to TB.
    TB = min(max_batch_tile, _round_up(B, SUBLANE))
    B_p = _round_up(B, TB)
    # v7x has 2 TensorCores and shards "parallel" grid axes across them: if a
    # large batch would collapse to a single grid step, split the tile.
    if B_p // TB < 2 and TB >= 256:
        TB = _round_up(TB // 2, SUBLANE)
        B_p = _round_up(B, TB)

    # Only sublane-align the streamed feature dim (no 128-lane inflation).
    x_p = jnp.zeros((B_p, din0_p), x.dtype).at[:B, :Din].set(x)

    flat_wb = []
    in_specs = [pl.BlockSpec((TB, din0_p), lambda i: (i, 0))]
    for w_p, b_p in padded:
        flat_wb.extend((w_p, b_p))
        # Weights/biases: whole array, constant block index -> stay resident.
        # TODO(synk): pl.Buffered(1) / scratch staging once layers are large
        # enough for the 2x pipeline weight buffering to matter (v7x VMEM).
        in_specs.append(pl.BlockSpec(w_p.shape, lambda i: (0, 0)))
        in_specs.append(pl.BlockSpec(b_p.shape, lambda i: (0, 0)))

    # Advisory cost hint so XLA schedules/overlaps the custom call sensibly.
    flops = 2 * B * sum(int(w.shape[0]) * int(w.shape[1]) for w, _ in params)
    param_bytes = sum(int(w.size) * w.dtype.itemsize +
                      int(b.size) * b.dtype.itemsize for w, b in params)
    bytes_accessed = (int(x.size) * x.dtype.itemsize + param_bytes
                      + B * dout * x.dtype.itemsize)

    kernel = functools.partial(_mlp_fused_kernel, n_layers=n_layers, dout=dout)
    out = pl.pallas_call(
        kernel,
        out_shape=jax.ShapeDtypeStruct((B_p, dout), x.dtype),
        grid=(B_p // TB,),
        in_specs=in_specs,
        out_specs=pl.BlockSpec((TB, dout), lambda i: (i, 0)),
        compiler_params=pltpu.CompilerParams(
            dimension_semantics=("parallel",),
        ),
        cost_estimate=pl.CostEstimate(
            flops=flops, transcendentals=0, bytes_accessed=bytes_accessed),
    )(x_p, *flat_wb)

    return out[:B, :]


def init_mlp_params(key, n_inputs, n_hidden_units, n_layers):
    """nn.Linear-shaped params; W stored transposed as (in, out)."""
    dims = []
    if n_layers == 1:
        dims.append((n_inputs, 1))
    else:
        for i in range(n_layers):
            if i == 0:
                dims.append((n_inputs, n_hidden_units))
            elif i == n_layers - 1:
                dims.append((n_hidden_units, 1))
            else:
                dims.append((n_hidden_units, n_hidden_units))
    params = []
    for din, dout in dims:
        key, kw, kb = jax.random.split(key, 3)
        bound = 1.0 / (din ** 0.5)  # PyTorch nn.Linear default uniform bound
        w = jax.random.uniform(kw, (din, dout), jnp.float32, -bound, bound)
        b = jax.random.uniform(kb, (dout,), jnp.float32, -bound, bound)
        params.append((w, b))
    return params


def mlp_reference(params, x):
    n = len(params)
    h = x
    for i, (w, b) in enumerate(params):
        h = h @ w + b
        if i < n - 1:
            h = jnp.maximum(h, 0.0)
    return h


if __name__ == "__main__":
    key = jax.random.PRNGKey(0)
    n_inputs = 16
    n_hidden_units = 32
    n_layers = 3
    batch = 8

    key, kx, kp = jax.random.split(key, 3)
    x = jax.random.normal(kx, (batch, n_inputs), jnp.float32)
    params = init_mlp_params(kp, n_inputs, n_hidden_units, n_layers)

    out = jax.block_until_ready(mlp_forward(params, x))
    ref = mlp_reference(params, x)
    assert out.shape == (batch, 1), out.shape
    # Tolerance covers TPU MXU default f32-matmul precision differences
    # (XLA's reference may take a bf16 pass while the Mosaic matmul runs full
    # f32); structural bugs would show up at >=1e-1.  Pass precision=HIGHEST
    # in both paths for ~1e-6 parity.
    assert jnp.allclose(out, ref, atol=5e-3, rtol=5e-3), "mismatch vs reference"

    # Also exercise the n_layers == 1 branch of the module spec.
    params1 = init_mlp_params(kp, n_inputs, n_hidden_units, 1)
    out1 = jax.block_until_ready(mlp_forward(params1, x))
    ref1 = mlp_reference(params1, x)
    assert out1.shape == (batch, 1), out1.shape
    assert jnp.allclose(out1, ref1, atol=5e-3, rtol=5e-3), "mismatch (1 layer)"

    print("KERNEL_OK")
</pallas_src>

<mosaic_0001>
module attributes {stable_mosaic.version = 11 : i64} {
  func.func @_mlp_fused_kernel(%arg0: i32, %arg1: memref<8x16xf32, #tpu.memory_space<vmem>>, %arg2: memref<16x128xf32, #tpu.memory_space<vmem>>, %arg3: memref<1x128xf32, #tpu.memory_space<vmem>>, %arg4: memref<128x128xf32, #tpu.memory_space<vmem>>, %arg5: memref<1x128xf32, #tpu.memory_space<vmem>>, %arg6: memref<128x128xf32, #tpu.memory_space<vmem>>, %arg7: memref<1x128xf32, #tpu.memory_space<vmem>>, %arg8: memref<8x1xf32, #tpu.memory_space<vmem>>) attributes {dimension_semantics = [#tpu.dimension_semantics<parallel>], iteration_bounds = array<i64: 1>, scalar_prefetch = 0 : i64, scratch_operands = 0 : i64, tpu.core_type = #tpu.core_type<tc>, window_params = [{transform_indices = @transform_0, window_bounds = array<i64: 8, 16>}, {pipeline_mode = #tpu.pipeline_mode<synchronous>, transform_indices = @transform_1, window_bounds = array<i64: 16, 128>}, {pipeline_mode = #tpu.pipeline_mode<synchronous>, transform_indices = @transform_2, window_bounds = array<i64: 1, 128>}, {pipeline_mode = #tpu.pipeline_mode<synchronous>, transform_indices = @transform_3, window_bounds = array<i64: 128, 128>}, {pipeline_mode = #tpu.pipeline_mode<synchronous>, transform_indices = @transform_4, window_bounds = array<i64: 1, 128>}, {pipeline_mode = #tpu.pipeline_mode<synchronous>, transform_indices = @transform_5, window_bounds = array<i64: 128, 128>}, {pipeline_mode = #tpu.pipeline_mode<synchronous>, transform_indices = @transform_6, window_bounds = array<i64: 1, 128>}, {transform_indices = @transform_7, window_bounds = array<i64: 8, 1>}]} {
    %c0 = arith.constant 0 : index
    %c0_0 = arith.constant 0 : index
    %0 = vector.load %arg1[%c0, %c0_0] : memref<8x16xf32, #tpu.memory_space<vmem>>, vector<8x16xf32>
    %c0_1 = arith.constant 0 : index
    %c0_2 = arith.constant 0 : index
    %1 = vector.load %arg2[%c0_1, %c0_2] : memref<16x128xf32, #tpu.memory_space<vmem>>, vector<16x128xf32>
    %c0_3 = arith.constant 0 : index
    %c0_4 = arith.constant 0 : index
    %2 = vector.load %arg3[%c0_3, %c0_4] : memref<1x128xf32, #tpu.memory_space<vmem>>, vector<1x128xf32>
    %cst = arith.constant dense<0.000000e+00> : vector<8x128xf32>
    %3 = tpu.matmul %0, %1, %cst {dimension_numbers = #tpu.dot_dimension_numbers<[1], [0], [0], [1], [0, 0, 1, 1], [], []>} : vector<8x16xf32>, vector<16x128xf32>, vector<8x128xf32> -> vector<8x128xf32>
    %4 = vector.broadcast %2 : vector<1x128xf32> to vector<8x128xf32>
    %5 = arith.addf %3, %4 : vector<8x128xf32>
    %cst_5 = arith.constant 0.000000e+00 : f32
    %6 = vector.broadcast %cst_5 : f32 to vector<8x128xf32>
    %7 = arith.maximumf %5, %6 : vector<8x128xf32>
    %c0_6 = arith.constant 0 : index
    %c0_7 = arith.constant 0 : index
    %8 = vector.load %arg4[%c0_6, %c0_7] : memref<128x128xf32, #tpu.memory_space<vmem>>, vector<128x128xf32>
    %c0_8 = arith.constant 0 : index
    %c0_9 = arith.constant 0 : index
    %9 = vector.load %arg5[%c0_8, %c0_9] : memref<1x128xf32, #tpu.memory_space<vmem>>, vector<1x128xf32>
    %cst_10 = arith.constant dense<0.000000e+00> : vector<8x128xf32>
    %10 = tpu.matmul %7, %8, %cst_10 {dimension_numbers = #tpu.dot_dimension_numbers<[1], [0], [0], [1], [0, 0, 1, 1], [], []>} : vector<8x128xf32>, vector<128x128xf32>, vector<8x128xf32> -> vector<8x128xf32>
    %11 = vector.broadcast %9 : vector<1x128xf32> to vector<8x128xf32>
    %12 = arith.addf %10, %11 : vector<8x128xf32>
    %cst_11 = arith.constant 0.000000e+00 : f32
    %13 = vector.broadcast %cst_11 : f32 to vector<8x128xf32>
    %14 = arith.maximumf %12, %13 : vector<8x128xf32>
    %c0_12 = arith.constant 0 : index
    %c0_13 = arith.constant 0 : index
    %15 = vector.load %arg6[%c0_12, %c0_13] : memref<128x128xf32, #tpu.memory_space<vmem>>, vector<128x128xf32>
    %c0_14 = arith.constant 0 : index
    %c0_15 = arith.constant 0 : index
    %16 = vector.load %arg7[%c0_14, %c0_15] : memref<1x128xf32, #tpu.memory_space<vmem>>, vector<1x128xf32>
    %cst_16 = arith.constant dense<0.000000e+00> : vector<8x128xf32>
    %17 = tpu.matmul %14, %15, %cst_16 {dimension_numbers = #tpu.dot_dimension_numbers<[1], [0], [0], [1], [0, 0, 1, 1], [], []>} : vector<8x128xf32>, vector<128x128xf32>, vector<8x128xf32> -> vector<8x128xf32>
    %18 = vector.broadcast %16 : vector<1x128xf32> to vector<8x128xf32>
    %19 = arith.addf %17, %18 : vector<8x128xf32>
    %20 = vector.extract_strided_slice %19 {offsets = [0, 0], sizes = [8, 1], strides = [1, 1]} : vector<8x128xf32> to vector<8x1xf32>
    %c0_17 = arith.constant 0 : index
    %c0_18 = arith.constant 0 : index
    %21 = vector.load %arg8[%c0_17, %c0_18] : memref<8x1xf32, #tpu.memory_space<vmem>>, vector<8x1xf32>
    tpu.vector_store %arg8[%c0_17, %c0_18], %20 {strides = array<i32>} : memref<8x1xf32, #tpu.memory_space<vmem>>, vector<8x1xf32>,
    return
  }
  func.func @transform_0(%arg0: i32) -> (i32, i32) {
    %c0_i32 = arith.constant 0 : i32
    %c0_i32_0 = arith.constant 0 : i32
    return %arg0, %c0_i32 : i32, i32
  }
  func.func @transform_1(%arg0: i32) -> (i32, i32) {
    %c0_i32 = arith.constant 0 : i32
    %c0_i32_0 = arith.constant 0 : i32
    %c0_i32_1 = arith.constant 0 : i32
    return %c0_i32, %c0_i32_0 : i32, i32
  }
  func.func @transform_2(%arg0: i32) -> (i32, i32) {
    %c0_i32 = arith.constant 0 : i32
    %c0_i32_0 = arith.constant 0 : i32
    %c0_i32_1 = arith.constant 0 : i32
    return %c0_i32, %c0_i32_0 : i32, i32
  }
  func.func @transform_3(%arg0: i32) -> (i32, i32) {
    %c0_i32 = arith.constant 0 : i32
    %c0_i32_0 = arith.constant 0 : i32
    %c0_i32_1 = arith.constant 0 : i32
    return %c0_i32, %c0_i32_0 : i32, i32
  }
  func.func @transform_4(%arg0: i32) -> (i32, i32) {
    %c0_i32 = arith.constant 0 : i32
    %c0_i32_0 = arith.constant 0 : i32
    %c0_i32_1 = arith.constant 0 : i32
    return %c0_i32, %c0_i32_0 : i32, i32
  }
  func.func @transform_5(%arg0: i32) -> (i32, i32) {
    %c0_i32 = arith.constant 0 : i32
    %c0_i32_0 = arith.constant 0 : i32
    %c0_i32_1 = arith.constant 0 : i32
    return %c0_i32, %c0_i32_0 : i32, i32
  }
  func.func @transform_6(%arg0: i32) -> (i32, i32) {
    %c0_i32 = arith.constant 0 : i32
    %c0_i32_0 = arith.constant 0 : i32
    %c0_i32_1 = arith.constant 0 : i32
    return %c0_i32, %c0_i32_0 : i32, i32
  }
  func.func @transform_7(%arg0: i32) -> (i32, i32) {
    %c0_i32 = arith.constant 0 : i32
    %c0_i32_0 = arith.constant 0 : i32
    return %arg0, %c0_i32 : i32, i32
  }
}

</mosaic_0001>

<llo_original>
// kernel: tpu_custom_call.1
$region0: #{tpu_custom_call.1}
  #allocation0 [shape = 'u32[]', space=smem, size = 0x4, offset = 0x4, fixed_abs, tag = 'smem constant byte address 0x4 - core index']
  #allocation1 [shape = 'u32[72,128]{1,0:T(1,128)}', space=vmem, size = 0x9000, scoped, tag = 'internal scratch']
  %s0 = inlined_call_operand.hbm [shape: f32[8,16], index: 0, kind: input, shape index: {}]
  %s1 = inlined_call_operand.hbm [shape: f32[16,128], index: 1, kind: input, shape index: {}]
  %s2 = inlined_call_operand.vmem [shape: f32[1,128], index: 2, kind: input, shape index: {}]
  %s3 = inlined_call_operand.hbm [shape: f32[128,128], index: 3, kind: input, shape index: {}]
  %s4 = inlined_call_operand.vmem [shape: f32[1,128], index: 4, kind: input, shape index: {}]
  %s5 = inlined_call_operand.hbm [shape: f32[128,128], index: 5, kind: input, shape index: {}]
  %s6 = inlined_call_operand.vmem [shape: f32[1,128], index: 6, kind: input, shape index: {}]
  %s7 = inlined_call_operand.vmem [shape: f32[8,1], index: 7, kind: output, shape index: {}]
  %s8 = sld [smem:[#allocation0]]
  $region54: #{tpu_custom_call.1} parent=0
    _
  %s10 = ssub.s32 1, %s8
  %s11 = scalar_select 0, %s10, %s8
  $region1: #{tpu_custom_call.1} parent=0
    #allocation2 [shape = 'u8[4096]{0}', space=vmem, size = 0x1000, scoped, tag = 'input window, operand 0, single buffered']
    #allocation3 [shape = 's32[1]{0}', space=sflag, size = 0x4, scoped, tag = 'scoped memory for tpu_custom_call.1']
    #allocation4 [shape = 'u8[8192]{0}', space=vmem, size = 0x2000, scoped, tag = 'input window, operand 1, single buffered']
    #allocation5 [shape = 's32[1]{0}', space=sflag, size = 0x4, scoped, tag = 'scoped memory for tpu_custom_call.1']
    #allocation6 [shape = 'u8[65536]{0}', space=vmem, size = 0x10000, scoped, tag = 'input window, operand 3, single buffered']
    #allocation7 [shape = 'u8[65536]{0}', space=vmem, size = 0x10000, scoped, tag = 'input window, operand 5, single buffered']
    #allocation8 [shape = 's32[1]{0}', space=sflag, size = 0x4, scoped, tag = 'scoped memory for tpu_custom_call.1']
    %12 = vsyncpa [#allocation3], 0
    %13 = vsyncpa [#allocation5], 0
    %14 = vsyncpa [#allocation8], 0
    // Predicated region
    $region2: #{tpu_custom_call.1} parent=1 // pred_check
      _
    $region3: #{tpu_custom_call.1} parent=1 // pred_check_branch
      %16 = sbr.rel (0) target = $region5
    $region4: #{tpu_custom_call.1} parent=1 // pred_region
      %18 = vsyncadd [#allocation3], 0
      %s20 = sshll.u32 %s0, 4
      %s21 = int_to_ptr.hbm [resolvable:$true] %s20
      %s22 = sshll.u32 [#allocation2], 4
      %s23 = int_to_ptr.vmem [resolvable:$true] %s22
      %25 = dma.hbm_to_vmem [thread:$0]  %s21, 128, %s23, [#allocation3]
    $region5: #{tpu_custom_call.1} parent=1 // pred_fallthru
      _
    // Predicated region
    $region6: #{tpu_custom_call.1} parent=1 // pred_check
      _
    $region7: #{tpu_custom_call.1} parent=1 // pred_check_branch
      %27 = sbr.rel (0) target = $region9
    $region8: #{tpu_custom_call.1} parent=1 // pred_region
      %29 = vsyncadd [#allocation5], 0
      %s30 = sshll.u32 %s1, 4
      %s31 = int_to_ptr.hbm [resolvable:$true] %s30
      %s32 = sshll.u32 [#allocation4], 4
      %s33 = int_to_ptr.vmem [resolvable:$true] %s32
      %38 = dma.hbm_to_vmem [thread:$0]  %s31, 256, %s33, [#allocation5], 128, 128, 8
    $region9: #{tpu_custom_call.1} parent=1 // pred_fallthru
      _
    // Predicated region
    $region10: #{tpu_custom_call.1} parent=1 // pred_check
      _
    $region11: #{tpu_custom_call.1} parent=1 // pred_check_branch
      %40 = sbr.rel (0) target = $region13
    $region12: #{tpu_custom_call.1} parent=1 // pred_region
      _
    $region13: #{tpu_custom_call.1} parent=1 // pred_fallthru
      _
    // Predicated region
    $region14: #{tpu_custom_call.1} parent=1 // pred_check
      _
    $region15: #{tpu_custom_call.1} parent=1 // pred_check_branch
      %42 = sbr.rel (0) target = $region17
    $region16: #{tpu_custom_call.1} parent=1 // pred_region
      %44 = vsyncadd [#allocation5], 0
      %s45 = sshll.u32 %s3, 4
      %s46 = int_to_ptr.hbm [resolvable:$true] %s45
      %s47 = sshll.u32 [#allocation6], 4
      %s48 = int_to_ptr.vmem [resolvable:$true] %s47
      %53 = dma.hbm_to_vmem [thread:$0]  %s46, 2048, %s48, [#allocation5], 128, 128, 8
    $region17: #{tpu_custom_call.1} parent=1 // pred_fallthru
      _
    // Predicated region
    $region18: #{tpu_custom_call.1} parent=1 // pred_check
      _
    $region19: #{tpu_custom_call.1} parent=1 // pred_check_branch
      %55 = sbr.rel (0) target = $region21
    $region20: #{tpu_custom_call.1} parent=1 // pred_region
      _
    $region21: #{tpu_custom_call.1} parent=1 // pred_fallthru
      _
    // Predicated region
    $region22: #{tpu_custom_call.1} parent=1 // pred_check
      _
    $region23: #{tpu_custom_call.1} parent=1 // pred_check_branch
      %57 = sbr.rel (0) target = $region25
    $region24: #{tpu_custom_call.1} parent=1 // pred_region
      %59 = vsyncadd [#allocation8], 0
      %s60 = sshll.u32 %s5, 4
      %s61 = int_to_ptr.hbm [resolvable:$true] %s60
      %s62 = sshll.u32 [#allocation7], 4
      %s63 = int_to_ptr.vmem [resolvable:$true] %s62
      %68 = dma.hbm_to_vmem [thread:$0]  %s61, 2048, %s63, [#allocation8], 128, 128, 8
    $region25: #{tpu_custom_call.1} parent=1 // pred_fallthru
      _
    // Predicated region
    $region26: #{tpu_custom_call.1} parent=1 // pred_check
      _
    $region27: #{tpu_custom_call.1} parent=1 // pred_check_branch
      %70 = sbr.rel (0) target = $region29
    $region28: #{tpu_custom_call.1} parent=1 // pred_region
      _
    $region29: #{tpu_custom_call.1} parent=1 // pred_fallthru
      _
    // Predicated region
    $region30: #{tpu_custom_call.1} parent=1 // pred_check
      _
    $region31: #{tpu_custom_call.1} parent=1 // pred_check_branch
      %72 = sbr.rel (0) target = $region33
    $region32: #{tpu_custom_call.1} parent=1 // pred_region
      %74 = dma.done [#allocation3], 128
    $region33: #{tpu_custom_call.1} parent=1 // pred_fallthru
      _
    // Predicated region
    $region34: #{tpu_custom_call.1} parent=1 // pred_check
      _
    $region35: #{tpu_custom_call.1} parent=1 // pred_check_branch
      %76 = sbr.rel (0) target = $region37
    $region36: #{tpu_custom_call.1} parent=1 // pred_region
      %78 = dma.done [#allocation5], 256
    $region37: #{tpu_custom_call.1} parent=1 // pred_fallthru
      _
    // Predicated region
    $region38: #{tpu_custom_call.1} parent=1 // pred_check
      _
    $region39: #{tpu_custom_call.1} parent=1 // pred_check_branch
      %80 = sbr.rel (0) target = $region41
    $region40: #{tpu_custom_call.1} parent=1 // pred_region
      %82 = dma.done [#allocation5], 2048
    $region41: #{tpu_custom_call.1} parent=1 // pred_fallthru
      _
    // Predicated region
    $region42: #{tpu_custom_call.1} parent=1 // pred_check
      _
    $region43: #{tpu_custom_call.1} parent=1 // pred_check_branch
      %84 = sbr.rel (0) target = $region45
    $region44: #{tpu_custom_call.1} parent=1 // pred_region
      %86 = dma.done [#allocation8], 2048
    $region45: #{tpu_custom_call.1} parent=1 // pred_fallthru
      _
    %v87 = vld [vmem:[#allocation2] sm:$0xff]
    %v88 = vld [vmem:[#allocation4] sm:$0xff]
    %v89 = vld [vmem:[#allocation4 + $0x8] sm:$0xff]
    %v90 = vld [vmem:[%s2] sm:$0x1]
    %v92 = vperm.slane %v90, 0
    %vm94 = vcmask 130048
    %v96 = vsel %vm94, %v87, 0
    %98 = vmatpush.msra.mxu0 0.0
    %99 = vmatpush.msra.mxu0 0.0
    %100 = vmatpush.msra.mxu0 0.0
    %101 = vmatpush.msra.mxu0 0.0
    %102 = vmatpush.msra.mxu0 0.0
    %103 = vmatpush.msra.mxu0 0.0
    %104 = vmatpush.msra.mxu0 0.0
    %105 = vmatpush.msra.mxu0 0.0
    %106 = vmatpush.msra.mxu0 0.0
    %107 = vmatpush.msra.mxu0 0.0
    %108 = vmatpush.msra.mxu0 0.0
    %109 = vmatpush.msra.mxu0 0.0
    %110 = vmatpush.msra.mxu0 0.0
    %111 = vmatpush.msra.mxu0 0.0
    %112 = vmatpush.msra.mxu0 %v89
    %113 = vmatpush.msra.mxu0 %v88
    %114 = vmatmul.f32.gmra.mxu0 %v96
    %v115 = vpop.f32.mrf.mxu0
    %v116 = vadd.f32 %v92, %v115
    %117 = vdwg.mxu0
    %v118 = vmax.f32 %v116, 0.0
    %v119 = vld [vmem:[#allocation6] sm:$0xff]
    %v120 = vld [vmem:[#allocation6 + $0x8] sm:$0xff]
    %v121 = vld [vmem:[#allocation6 + $0x10] sm:$0xff]
    %v122 = vld [vmem:[#allocation6 + $0x18] sm:$0xff]
    %v123 = vld [vmem:[#allocation6 + $0x20] sm:$0xff]
    %v124 = vld [vmem:[#allocation6 + $0x28] sm:$0xff]
    %v125 = vld [vmem:[#allocation6 + $0x30] sm:$0xff]
    %v126 = vld [vmem:[#allocation6 + $0x38] sm:$0xff]
    %v127 = vld [vmem:[#allocation6 + $0x40] sm:$0xff]
    %v128 = vld [vmem:[#allocation6 + $0x48] sm:$0xff]
    %v129 = vld [vmem:[#allocation6 + $0x50] sm:$0xff]
    %v130 = vld [vmem:[#allocation6 + $0x58] sm:$0xff]
    %v131 = vld [vmem:[#allocation6 + $0x60] sm:$0xff]
    %v132 = vld [vmem:[#allocation6 + $0x68] sm:$0xff]
    %v133 = vld [vmem:[#allocation6 + $0x70] sm:$0xff]
    %v134 = vld [vmem:[#allocation6 + $0x78] sm:$0xff]
    %v135 = vld [vmem:[%s4] sm:$0x1]
    %v137 = vperm.slane %v135, 0
    %139 = vmatpush.msra.mxu0 %v134
    %140 = vmatpush.msra.mxu0 %v133
    %141 = vmatpush.msra.mxu0 %v132
    %142 = vmatpush.msra.mxu0 %v131
    %143 = vmatpush.msra.mxu0 %v130
    %144 = vmatpush.msra.mxu0 %v129
    %145 = vmatpush.msra.mxu0 %v128
    %146 = vmatpush.msra.mxu0 %v127
    %147 = vmatpush.msra.mxu0 %v126
    %148 = vmatpush.msra.mxu0 %v125
    %149 = vmatpush.msra.mxu0 %v124
    %150 = vmatpush.msra.mxu0 %v123
    %151 = vmatpush.msra.mxu0 %v122
    %152 = vmatpush.msra.mxu0 %v121
    %153 = vmatpush.msra.mxu0 %v120
    %154 = vmatpush.msra.mxu0 %v119
    %155 = vmatmul.f32.gmra.mxu0 %v118
    %v156 = vpop.f32.mrf.mxu0
    %v157 = vadd.f32 %v137, %v156
    %158 = vdwg.mxu0
    %v159 = vmax.f32 %v157, 0.0
    %v160 = vld [vmem:[#allocation7] sm:$0xff]
    %v161 = vld [vmem:[#allocation7 + $0x8] sm:$0xff]
    %v162 = vld [vmem:[#allocation7 + $0x10] sm:$0xff]
    %v163 = vld [vmem:[#allocation7 + $0x18] sm:$0xff]
    %v164 = vld [vmem:[#allocation7 + $0x20] sm:$0xff]
    %v165 = vld [vmem:[#allocation7 + $0x28] sm:$0xff]
    %v166 = vld [vmem:[#allocation7 + $0x30] sm:$0xff]
    %v167 = vld [vmem:[#allocation7 + $0x38] sm:$0xff]
    %v168 = vld [vmem:[#allocation7 + $0x40] sm:$0xff]
    %v169 = vld [vmem:[#allocation7 + $0x48] sm:$0xff]
    %v170 = vld [vmem:[#allocation7 + $0x50] sm:$0xff]
    %v171 = vld [vmem:[#allocation7 + $0x58] sm:$0xff]
    %v172 = vld [vmem:[#allocation7 + $0x60] sm:$0xff]
    %v173 = vld [vmem:[#allocation7 + $0x68] sm:$0xff]
    %v174 = vld [vmem:[#allocation7 + $0x70] sm:$0xff]
    %v175 = vld [vmem:[#allocation7 + $0x78] sm:$0xff]
    %v176 = vld [vmem:[%s6] sm:$0x1]
    %v178 = vperm.slane %v176, 0
    %180 = vmatpush.msra.mxu0 %v175
    %181 = vmatpush.msra.mxu0 %v174
    %182 = vmatpush.msra.mxu0 %v173
    %183 = vmatpush.msra.mxu0 %v172
    %184 = vmatpush.msra.mxu0 %v171
    %185 = vmatpush.msra.mxu0 %v170
    %186 = vmatpush.msra.mxu0 %v169
    %187 = vmatpush.msra.mxu0 %v168
    %188 = vmatpush.msra.mxu0 %v167
    %189 = vmatpush.msra.mxu0 %v166
    %190 = vmatpush.msra.mxu0 %v165
    %191 = vmatpush.msra.mxu0 %v164
    %192 = vmatpush.msra.mxu0 %v163
    %193 = vmatpush.msra.mxu0 %v162
    %194 = vmatpush.msra.mxu0 %v161
    %195 = vmatpush.msra.mxu0 %v160
    %196 = vmatmul.f32.gmra.mxu0 %v159
    %v197 = vpop.f32.mrf.mxu0
    %v198 = vadd.f32 %v178, %v197
    %199 = vdwg.mxu0
    %vm200 = vcmask 7168
    %201 = vst.msk [vmem:[%s7] sm:$0xff] %vm200, %v198
    // Predicated region
    $region46: #{tpu_custom_call.1} parent=1 // pred_check
      _
    $region47: #{tpu_custom_call.1} parent=1 // pred_check_branch
      %203 = sbr.rel (0) target = $region49
    $region48: #{tpu_custom_call.1} parent=1 // pred_region
      _
    $region49: #{tpu_custom_call.1} parent=1 // pred_fallthru
      _
    // Predicated region
    $region50: #{tpu_custom_call.1} parent=1 // pred_check
      _
    $region51: #{tpu_custom_call.1} parent=1 // pred_check_branch
      %205 = sbr.rel (0) target = $region53
    $region52: #{tpu_custom_call.1} parent=1 // pred_region
      _
    $region53: #{tpu_custom_call.1} parent=1 // pred_fallthru
      _
    %206 = vsyncpa [#allocation3], 1
    %207 = vsyncpa [#allocation5], 1
    %208 = vsyncpa [#allocation8], 1

</llo_original>
